<compile_context>
chip_gen: v5e
topology: v5e:2x2
jax: 0.10.0
libtpu: 0.0.40
codegen_flags: <defaults>
</compile_context>

<pallas_src>
import numpy as np
import jax
import jax.numpy as jnp
from jax.experimental import pallas as pl
from jax.experimental.pallas import tpu as pltpu


_LANE = 128                      # pad target; 128 fills v5e MXU, use 256 for max v6e/v7x fill
_MAX_BATCH_TILE = 512            # ~85% of HBM roofline per measured tile sweep
_MAX_OUT_TILE = 512              # output-N tile so large embed dims stream W2
_VMEM_LIMIT = 48 * 1024 * 1024   # headroom under v7x's 64 MiB physical VMEM


# ----------------------------- helpers ------------------------------------- #

def _round_up(x, m):
    return (x + m - 1) // m * m


def _batch_tile(n):
    """Batch (sublane) tile: 8-aligned, capped, >=2 grid steps when n>=16 so
    the 'parallel' batch axis can be sharded across v7x's two TensorCores."""
    if n < 16:
        return n                       # single step; block == full batch dim
    tn = min(_MAX_BATCH_TILE, -(-n // 2))
    return max(8, (tn // 8) * 8)


def _pad2(a, rows, cols, dtype):
    """Zero-pad a 2-D array to (rows, cols) and cast (one-time layout work)."""
    r, c = a.shape
    out = jnp.zeros((rows, cols), dtype)
    return out.at[:r, :c].set(a.astype(dtype))


# ----------------------------- kernels ------------------------------------- #

def _mlp1_kernel(x_ref, w1_ref, b1_ref, w2_ref, b2_ref, out_ref, h_ref):
    """out[:, j-tile] = ReLU(x @ W1 + b1) @ W2[:, j-tile] + b2[:, j-tile].
    Hidden is computed once per batch tile (j == 0) into bf16 VMEM scratch."""
    @pl.when(pl.program_id(1) == 0)
    def _():
        h = jnp.dot(x_ref[...].astype(jnp.bfloat16), w1_ref[...],
                    preferred_element_type=jnp.float32)
        h = h + b1_ref[...]
        h_ref[...] = jnp.maximum(h, 0.0).astype(h_ref.dtype)

    out = jnp.dot(h_ref[...], w2_ref[...],
                  preferred_element_type=jnp.float32) + b2_ref[...]
    out_ref[...] = out.astype(out_ref.dtype)


def _mlp2_kernel(x1_ref, x2_ref, w1a_ref, w1b_ref, b1_ref, w2_ref, b2_ref,
                 out_ref, h_ref):
    """Two-modality head projector with the concat fused into split matmuls:
    hidden = ReLU(x1 @ W1a + x2 @ W1b + b1); out[:, j] = hidden @ W2[:, j] + b2."""
    @pl.when(pl.program_id(1) == 0)
    def _():
        h = jnp.dot(x1_ref[...].astype(jnp.bfloat16), w1a_ref[...],
                    preferred_element_type=jnp.float32)
        h = h + jnp.dot(x2_ref[...].astype(jnp.bfloat16), w1b_ref[...],
                        preferred_element_type=jnp.float32)
        h = h + b1_ref[...]
        h_ref[...] = jnp.maximum(h, 0.0).astype(h_ref.dtype)

    out = jnp.dot(h_ref[...], w2_ref[...],
                  preferred_element_type=jnp.float32) + b2_ref[...]
    out_ref[...] = out.astype(out_ref.dtype)


# ----------------------------- wrappers ------------------------------------ #

def fused_mlp(x, w1, b1, w2, b2):
    n, d = x.shape
    eh = w1.shape[1]                 # padded hidden width (multiple of 128)
    eo = w2.shape[1]                 # padded output width (multiple of 128)
    tn = _batch_tile(n)
    tno = min(eo, _MAX_OUT_TILE)
    grid = (pl.cdiv(n, tn), pl.cdiv(eo, tno))
    return pl.pallas_call(
        _mlp1_kernel,
        out_shape=jax.ShapeDtypeStruct((n, eo), jnp.float32),
        grid_spec=pltpu.PrefetchScalarGridSpec(
            num_scalar_prefetch=0,
            grid=grid,
            in_specs=[
                pl.BlockSpec((tn, d), lambda i, j: (i, 0)),
                pl.BlockSpec((d, eh), lambda i, j: (0, 0)),
                pl.BlockSpec((1, eh), lambda i, j: (0, 0)),
                pl.BlockSpec((eh, tno), lambda i, j: (0, j)),
                pl.BlockSpec((1, tno), lambda i, j: (0, j)),
            ],
            out_specs=pl.BlockSpec((tn, tno), lambda i, j: (i, j)),
            scratch_shapes=[pltpu.VMEM((tn, eh), jnp.bfloat16)],
        ),
        compiler_params=pltpu.CompilerParams(
            dimension_semantics=("parallel", "arbitrary"),
            vmem_limit_bytes=_VMEM_LIMIT),
    )(x, w1, b1, w2, b2)


def fused_mlp2(x1, x2, w1a, w1b, b1, w2, b2):
    n, d1 = x1.shape
    d2 = x2.shape[1]
    eh = w1a.shape[1]
    eo = w2.shape[1]
    tn = _batch_tile(n)
    tno = min(eo, _MAX_OUT_TILE)
    grid = (pl.cdiv(n, tn), pl.cdiv(eo, tno))
    return pl.pallas_call(
        _mlp2_kernel,
        out_shape=jax.ShapeDtypeStruct((n, eo), jnp.float32),
        grid_spec=pltpu.PrefetchScalarGridSpec(
            num_scalar_prefetch=0,
            grid=grid,
            in_specs=[
                pl.BlockSpec((tn, d1), lambda i, j: (i, 0)),
                pl.BlockSpec((tn, d2), lambda i, j: (i, 0)),
                pl.BlockSpec((d1, eh), lambda i, j: (0, 0)),
                pl.BlockSpec((d2, eh), lambda i, j: (0, 0)),
                pl.BlockSpec((1, eh), lambda i, j: (0, 0)),
                pl.BlockSpec((eh, tno), lambda i, j: (0, j)),
                pl.BlockSpec((1, tno), lambda i, j: (0, j)),
            ],
            out_specs=pl.BlockSpec((tn, tno), lambda i, j: (i, j)),
            scratch_shapes=[pltpu.VMEM((tn, eh), jnp.bfloat16)],
        ),
        compiler_params=pltpu.CompilerParams(
            dimension_semantics=("parallel", "arbitrary"),
            vmem_limit_bytes=_VMEM_LIMIT),
    )(x1, x2, w1a, w1b, b1, w2, b2)


# ------------------------ parameter preparation ----------------------------- #

def prepare_params(params, lane_multiple=_LANE):
    """One-time layout work so the per-call path has ZERO layout ops:
      * pad hidden/output dims to a lane multiple (dense vst, full MXU width),
      * cast weights to bf16 (peak MXU path, halved weight residency/traffic),
      * pre-split head W1 at the modality boundary (concat fused in-kernel).
    Pad regions are zero, so padded hidden/output columns are exactly 0."""
    e = params["proj"][0]["w2"].shape[1]
    ep = _round_up(e, lane_multiple)

    def prep_mlp(p):
        d = p["w1"].shape[0]
        return {
            "w1": _pad2(p["w1"], d, ep, jnp.bfloat16),
            "b1": _pad2(p["b1"], 1, ep, jnp.float32),
            "w2": _pad2(p["w2"], ep, ep, jnp.bfloat16),
            "b2": _pad2(p["b2"], 1, ep, jnp.float32),
        }

    prepared = {"embed_dim": e, "proj": [prep_mlp(p) for p in params["proj"]]}

    hp = params["head"]
    d1 = params["proj"][0]["w1"].shape[0]
    dsum = hp["w1"].shape[0]
    prepared["head"] = {
        "w1a": _pad2(hp["w1"][:d1], d1, ep, jnp.bfloat16),
        "w1b": _pad2(hp["w1"][d1:], dsum - d1, ep, jnp.bfloat16),
        "b1": _pad2(hp["b1"], 1, ep, jnp.float32),
        "w2": _pad2(hp["w2"], ep, ep, jnp.bfloat16),
        "b2": _pad2(hp["b2"], 1, ep, jnp.float32),
    }
    return prepared


# ----------------------------- forward -------------------------------------- #

def get_common_embedding(z, prepared, mask_modalities):
    active = int(np.sum(mask_modalities))
    e = prepared["embed_dim"]
    if active == 1:
        idx = int(np.nonzero(np.asarray(mask_modalities))[0][0])
        p = prepared["proj"][idx]
        out = fused_mlp(z[idx], p["w1"], p["b1"], p["w2"], p["b2"])
    elif active == 2:
        hp = prepared["head"]
        out = fused_mlp2(z[0], z[1], hp["w1a"], hp["w1b"],
                         hp["b1"], hp["w2"], hp["b2"])
    else:
        raise NotImplementedError()
    if out.shape[-1] != e:
        out = out[:, :e]       # only when embed_dim was not already lane-dense
    return out


def mlp_fusion_forward(x_list, prepared, mask_modalities=None):
    """Mirrors MLPFusion.forward (encoders == identity)."""
    num_mod = len(prepared["proj"])
    list_mask = None
    if mask_modalities is None:
        mask_modalities = num_mod * [True]
    elif (isinstance(mask_modalities, list) and len(mask_modalities) > 0
          and isinstance(mask_modalities[0], list)):
        list_mask = mask_modalities
        mask_modalities = num_mod * [True]
    assert len(mask_modalities) == num_mod
    assert len(x_list) == int(np.sum(mask_modalities))
    z = list(x_list)  # TODO(synk): encoders applied upstream (identity here)
    if list_mask is not None:
        return [get_common_embedding(z, prepared, m) for m in list_mask]
    return get_common_embedding(z, prepared, mask_modalities)


# ----------------------------- reference ----------------------------------- #

def _ref_mlp(x, p):
    h = jnp.maximum(x @ p["w1"] + p["b1"], 0.0)
    return h @ p["w2"] + p["b2"]


def ref_forward(x_list, params, mask_modalities=None):
    num_mod = len(params["proj"])
    list_mask = None
    if mask_modalities is None:
        mask_modalities = num_mod * [True]
    elif isinstance(mask_modalities[0], list):
        list_mask = mask_modalities
        mask_modalities = num_mod * [True]
    z = list(x_list)

    def common(mask):
        s = int(np.sum(mask))
        if s == 1:
            idx = int(np.nonzero(np.asarray(mask))[0][0])
            return _ref_mlp(z[idx], params["proj"][idx])
        return _ref_mlp(jnp.concatenate(z, axis=-1), params["head"])

    if list_mask is not None:
        return [common(m) for m in list_mask]
    return common(mask_modalities)


# ----------------------------- test ---------------------------------------- #

def make_params(key, mod_dims, embed_dim):
    f32 = jnp.float32
    params = {"proj": [], "head": None}
    for i, d in enumerate(mod_dims):
        k = jax.random.fold_in(key, i)
        ks = jax.random.split(k, 4)
        params["proj"].append({
            "w1": 0.1 * jax.random.normal(ks[0], (d, embed_dim), f32),
            "b1": 0.05 * jax.random.normal(ks[1], (1, embed_dim), f32),
            "w2": 0.1 * jax.random.normal(ks[2], (embed_dim, embed_dim), f32),
            "b2": 0.05 * jax.random.normal(ks[3], (1, embed_dim), f32),
        })
    kh = jax.random.fold_in(key, 1000)
    ks = jax.random.split(kh, 4)
    dsum = int(sum(mod_dims))
    params["head"] = {
        "w1": 0.1 * jax.random.normal(ks[0], (dsum, embed_dim), f32),
        "b1": 0.05 * jax.random.normal(ks[1], (1, embed_dim), f32),
        "w2": 0.1 * jax.random.normal(ks[2], (embed_dim, embed_dim), f32),
        "b2": 0.05 * jax.random.normal(ks[3], (1, embed_dim), f32),
    }
    return params


if __name__ == "__main__":
    mod_dims = [16, 24]
    embed_dim = 96          # deliberately not a lane multiple -> exercises padding
    batch = 16              # >=16 -> 2 batch-grid steps (v7x megacore sharding)

    key = jax.random.PRNGKey(0)
    k1, k2, kp = jax.random.split(key, 3)
    x1 = jax.random.normal(k1, (batch, mod_dims[0]), jnp.float32)
    x2 = jax.random.normal(k2, (batch, mod_dims[1]), jnp.float32)

    params = make_params(kp, mod_dims, embed_dim)     # raw f32 (PyTorch layout)
    prepared = prepare_params(params)                 # one-time pad/bf16/split

    # bf16 matmul inputs with f32 accumulation vs pure-f32 reference.
    RTOL, ATOL = 2e-2, 2e-2

    # Path 1: both modalities active -> head_projector(cat(z)) (concat fused).
    out_head = mlp_fusion_forward([x1, x2], prepared, None)
    out_head = jax.block_until_ready(out_head)
    ref_head = ref_forward([x1, x2], params, None)
    assert out_head.shape == (batch, embed_dim)
    np.testing.assert_allclose(np.asarray(out_head), np.asarray(ref_head),
                               rtol=RTOL, atol=ATOL)

    # Path 2: list-of-masks -> single-modality projectors.
    outs = mlp_fusion_forward([x1, x2], prepared,
                              [[True, False], [False, True]])
    outs = [jax.block_until_ready(o) for o in outs]
    refs = ref_forward([x1, x2], params, [[True, False], [False, True]])
    for o, r in zip(outs, refs):
        assert o.shape == (batch, embed_dim)
        np.testing.assert_allclose(np.asarray(o), np.asarray(r),
                                   rtol=RTOL, atol=ATOL)

    print("KERNEL_OK")
</pallas_src>

<mosaic_0001>
module attributes {stable_mosaic.version = 11 : i64} {
  func.func @_mlp2_kernel(%arg0: i32, %arg1: i32, %arg2: memref<8x16xf32, #tpu.memory_space<vmem>>, %arg3: memref<8x24xf32, #tpu.memory_space<vmem>>, %arg4: memref<16x128xbf16, #tpu.memory_space<vmem>>, %arg5: memref<24x128xbf16, #tpu.memory_space<vmem>>, %arg6: memref<1x128xf32, #tpu.memory_space<vmem>>, %arg7: memref<128x128xbf16, #tpu.memory_space<vmem>>, %arg8: memref<1x128xf32, #tpu.memory_space<vmem>>, %arg9: memref<8x128xf32, #tpu.memory_space<vmem>>, %arg10: memref<8x128xbf16, #tpu.memory_space<vmem>>) attributes {dimension_semantics = [#tpu.dimension_semantics<parallel>, #tpu.dimension_semantics<arbitrary>], iteration_bounds = array<i64: 2, 1>, scalar_prefetch = 0 : i64, scratch_operands = 1 : i64, tpu.core_type = #tpu.core_type<tc>, window_params = [{transform_indices = @transform_0, window_bounds = array<i64: 8, 16>}, {transform_indices = @transform_1, window_bounds = array<i64: 8, 24>}, {pipeline_mode = #tpu.pipeline_mode<synchronous>, transform_indices = @transform_2, window_bounds = array<i64: 16, 128>}, {pipeline_mode = #tpu.pipeline_mode<synchronous>, transform_indices = @transform_3, window_bounds = array<i64: 24, 128>}, {pipeline_mode = #tpu.pipeline_mode<synchronous>, transform_indices = @transform_4, window_bounds = array<i64: 1, 128>}, {transform_indices = @transform_5, window_bounds = array<i64: 128, 128>}, {transform_indices = @transform_6, window_bounds = array<i64: 1, 128>}, {transform_indices = @transform_7, window_bounds = array<i64: 8, 128>}]} {
    %c0_i32 = arith.constant 0 : i32
    %0 = arith.cmpi eq, %arg1, %c0_i32 : i32
    %1 = arith.extui %0 : i1 to i32
    %c0_i32_0 = arith.constant 0 : i32
    %2 = arith.cmpi ne, %1, %c0_i32_0 : i32
    scf.if %2 {
      %c0_8 = arith.constant 0 : index
      %c0_9 = arith.constant 0 : index
      %10 = vector.load %arg2[%c0_8, %c0_9] : memref<8x16xf32, #tpu.memory_space<vmem>>, vector<8x16xf32>
      %11 = arith.truncf %10 : vector<8x16xf32> to vector<8x16xbf16>
      %c0_10 = arith.constant 0 : index
      %c0_11 = arith.constant 0 : index
      %12 = vector.load %arg4[%c0_10, %c0_11] : memref<16x128xbf16, #tpu.memory_space<vmem>>, vector<16x128xbf16>
      %cst_12 = arith.constant dense<0.000000e+00> : vector<8x128xf32>
      %13 = tpu.matmul %11, %12, %cst_12 {dimension_numbers = #tpu.dot_dimension_numbers<[1], [0], [0], [1], [0, 0, 1, 1], [], []>} : vector<8x16xbf16>, vector<16x128xbf16>, vector<8x128xf32> -> vector<8x128xf32>
      %c0_13 = arith.constant 0 : index
      %c0_14 = arith.constant 0 : index
      %14 = vector.load %arg3[%c0_13, %c0_14] : memref<8x24xf32, #tpu.memory_space<vmem>>, vector<8x24xf32>
      %15 = arith.truncf %14 : vector<8x24xf32> to vector<8x24xbf16>
      %c0_15 = arith.constant 0 : index
      %c0_16 = arith.constant 0 : index
      %16 = vector.load %arg5[%c0_15, %c0_16] : memref<24x128xbf16, #tpu.memory_space<vmem>>, vector<24x128xbf16>
      %cst_17 = arith.constant dense<0.000000e+00> : vector<8x128xf32>
      %17 = tpu.matmul %15, %16, %cst_17 {dimension_numbers = #tpu.dot_dimension_numbers<[1], [0], [0], [1], [0, 0, 1, 1], [], []>} : vector<8x24xbf16>, vector<24x128xbf16>, vector<8x128xf32> -> vector<8x128xf32>
      %18 = arith.addf %13, %17 : vector<8x128xf32>
      %c0_18 = arith.constant 0 : index
      %c0_19 = arith.constant 0 : index
      %19 = vector.load %arg6[%c0_18, %c0_19] : memref<1x128xf32, #tpu.memory_space<vmem>>, vector<1x128xf32>
      %20 = vector.broadcast %19 : vector<1x128xf32> to vector<8x128xf32>
      %21 = arith.addf %18, %20 : vector<8x128xf32>
      %cst_20 = arith.constant 0.000000e+00 : f32
      %22 = vector.broadcast %cst_20 : f32 to vector<8x128xf32>
      %23 = arith.maximumf %21, %22 : vector<8x128xf32>
      %24 = arith.truncf %23 : vector<8x128xf32> to vector<8x128xbf16>
      %c0_21 = arith.constant 0 : index
      %c0_22 = arith.constant 0 : index
      %25 = vector.load %arg10[%c0_21, %c0_22] : memref<8x128xbf16, #tpu.memory_space<vmem>>, vector<8x128xbf16>
      tpu.vector_store %arg10[%c0_21, %c0_22], %24 {strides = array<i32>} : memref<8x128xbf16, #tpu.memory_space<vmem>>, vector<8x128xbf16>,
    } else {
    }
    %c0 = arith.constant 0 : index
    %c0_1 = arith.constant 0 : index
    %3 = vector.load %arg10[%c0, %c0_1] : memref<8x128xbf16, #tpu.memory_space<vmem>>, vector<8x128xbf16>
    %c0_2 = arith.constant 0 : index
    %c0_3 = arith.constant 0 : index
    %4 = vector.load %arg7[%c0_2, %c0_3] : memref<128x128xbf16, #tpu.memory_space<vmem>>, vector<128x128xbf16>
    %cst = arith.constant dense<0.000000e+00> : vector<8x128xf32>
    %5 = tpu.matmul %3, %4, %cst {dimension_numbers = #tpu.dot_dimension_numbers<[1], [0], [0], [1], [0, 0, 1, 1], [], []>} : vector<8x128xbf16>, vector<128x128xbf16>, vector<8x128xf32> -> vector<8x128xf32>
    %c0_4 = arith.constant 0 : index
    %c0_5 = arith.constant 0 : index
    %6 = vector.load %arg8[%c0_4, %c0_5] : memref<1x128xf32, #tpu.memory_space<vmem>>, vector<1x128xf32>
    %7 = vector.broadcast %6 : vector<1x128xf32> to vector<8x128xf32>
    %8 = arith.addf %5, %7 : vector<8x128xf32>
    %c0_6 = arith.constant 0 : index
    %c0_7 = arith.constant 0 : index
    %9 = vector.load %arg9[%c0_6, %c0_7] : memref<8x128xf32, #tpu.memory_space<vmem>>, vector<8x128xf32>
    tpu.vector_store %arg9[%c0_6, %c0_7], %8 {strides = array<i32>} : memref<8x128xf32, #tpu.memory_space<vmem>>, vector<8x128xf32>,
    return
  }
  func.func @transform_0(%arg0: i32, %arg1: i32) -> (i32, i32) {
    %c0_i32 = arith.constant 0 : i32
    %c0_i32_0 = arith.constant 0 : i32
    return %arg0, %c0_i32 : i32, i32
  }
  func.func @transform_1(%arg0: i32, %arg1: i32) -> (i32, i32) {
    %c0_i32 = arith.constant 0 : i32
    %c0_i32_0 = arith.constant 0 : i32
    return %arg0, %c0_i32 : i32, i32
  }
  func.func @transform_2(%arg0: i32, %arg1: i32) -> (i32, i32) {
    %c0_i32 = arith.constant 0 : i32
    %c0_i32_0 = arith.constant 0 : i32
    %c0_i32_1 = arith.constant 0 : i32
    return %c0_i32, %c0_i32_0 : i32, i32
  }
  func.func @transform_3(%arg0: i32, %arg1: i32) -> (i32, i32) {
    %c0_i32 = arith.constant 0 : i32
    %c0_i32_0 = arith.constant 0 : i32
    %c0_i32_1 = arith.constant 0 : i32
    return %c0_i32, %c0_i32_0 : i32, i32
  }
  func.func @transform_4(%arg0: i32, %arg1: i32) -> (i32, i32) {
    %c0_i32 = arith.constant 0 : i32
    %c0_i32_0 = arith.constant 0 : i32
    %c0_i32_1 = arith.constant 0 : i32
    return %c0_i32, %c0_i32_0 : i32, i32
  }
  func.func @transform_5(%arg0: i32, %arg1: i32) -> (i32, i32) {
    %c0_i32 = arith.constant 0 : i32
    %c0_i32_0 = arith.constant 0 : i32
    return %c0_i32, %arg1 : i32, i32
  }
  func.func @transform_6(%arg0: i32, %arg1: i32) -> (i32, i32) {
    %c0_i32 = arith.constant 0 : i32
    %c0_i32_0 = arith.constant 0 : i32
    return %c0_i32, %arg1 : i32, i32
  }
  func.func @transform_7(%arg0: i32, %arg1: i32) -> (i32, i32) {
    %c0_i32 = arith.constant 0 : i32
    return %arg0, %arg1 : i32, i32
  }
}

</mosaic_0001>

<llo_original>
// kernel: tpu_custom_call.1
$region0: #{tpu_custom_call.1}
  #allocation0 [shape = 'u32[]', space=smem, size = 0x4, offset = 0x4, fixed_abs, tag = 'smem constant byte address 0x4 - core index']
  #allocation1 [shape = 'u32[72,128]{1,0:T(1,128)}', space=vmem, size = 0x9000, scoped, tag = 'internal scratch']
  #allocation2 [shape = 'bf16[8,128]{1,0:T(8,128)(2,1)}', space=vmem, size = 0x800, scoped, tag = 'scratch operand']
  %s0 = inlined_call_operand.hbm [shape: f32[16,16], index: 0, kind: input, shape index: {}]
  %s1 = inlined_call_operand.hbm [shape: f32[16,24], index: 1, kind: input, shape index: {}]
  %s2 = inlined_call_operand.hbm [shape: bf16[16,128], index: 2, kind: input, shape index: {}]
  %s3 = inlined_call_operand.hbm [shape: bf16[24,128], index: 3, kind: input, shape index: {}]
  %s4 = inlined_call_operand.vmem [shape: f32[1,128], index: 4, kind: input, shape index: {}]
  %s5 = inlined_call_operand.hbm [shape: bf16[128,128], index: 5, kind: input, shape index: {}]
  %s6 = inlined_call_operand.vmem [shape: f32[1,128], index: 6, kind: input, shape index: {}]
  %s7 = inlined_call_operand.hbm [shape: f32[16,128], index: 7, kind: output, shape index: {}]
  %s8 = sld [smem:[#allocation0]]
  $region85: #{tpu_custom_call.1} parent=0
    _
  %s10 = ssub.s32 1, %s8
  %s11 = scalar_select 0, %s10, %s8
  $region1: #{tpu_custom_call.1} parent=0
    #allocation3 [shape = 'u8[8192]{0}', space=vmem, size = 0x2000, scoped, tag = 'input window, operand 0']
    #allocation4 [shape = 's32[2]{0}', space=sflag, size = 0x8, scoped, tag = 'scoped memory for tpu_custom_call.1']
    #allocation5 [shape = 's32[2]{0}', space=sflag, size = 0x8, scoped, tag = 'scoped memory for tpu_custom_call.1']
    #allocation6 [shape = 'u8[8192]{0}', space=vmem, size = 0x2000, scoped, tag = 'input window, operand 1']
    #allocation7 [shape = 's32[2]{0}', space=sflag, size = 0x8, scoped, tag = 'scoped memory for tpu_custom_call.1']
    #allocation8 [shape = 'u8[4096]{0}', space=vmem, size = 0x1000, scoped, tag = 'input window, operand 2, single buffered']
    #allocation9 [shape = 'u8[6144]{0}', space=vmem, size = 0x1800, scoped, tag = 'input window, operand 3, single buffered']
    #allocation10 [shape = 's32[1]{0}', space=sflag, size = 0x4, scoped, tag = 'scoped memory for tpu_custom_call.1']
    #allocation11 [shape = 'u8[32768]{0}', space=vmem, size = 0x8000, scoped, tag = 'input window, operand 5, single buffered']
    #allocation12 [shape = 'u8[8192]{0}', space=vmem, size = 0x2000, scoped, tag = 'output window, operand 0']
    %12 = vsyncpa [#allocation4], 0
    %s13 = scalar_lea.sflag [#allocation4], 1
    %14 = vsyncpa %s13, 0
    %15 = vsyncpa [#allocation7], 0
    %s16 = scalar_lea.sflag [#allocation7], 1
    %17 = vsyncpa %s16, 0
    %18 = vsyncpa [#allocation10], 0
    %19 = vsyncpa [#allocation5], 0
    %s20 = scalar_lea.sflag [#allocation5], 1
    %21 = vsyncpa %s20, 0
    loop: start=0, step=1, limit=4
    $region2: #{tpu_custom_call.1} parent=1 // loop_pre_header
      _
    $region3: #{tpu_custom_call.1} parent=1 // loop_header
      %s23 = sphi 0, %s27
      %p24 = scmp.ge.s32.totalorder %s23, 4
      %s30 = sphi 0, %s42
      %s31 = sphi 0, %s38
      %s32 = sphi 0, %s30
      %s33 = sphi 0, %s31
      %s34 = sphi 0, %s32
      %s35 = sphi 0, %s33
      %s45 = sphi 0, %s47
      %s48 = sphi 0, %s45
      %s49 = sphi 0, %s48
      %s65 = sphi 0, %s49
      %s71 = sphi 0, %s73
      %s74 = sphi 0, %s71
      %s75 = sphi 0, %s74
      %s91 = sphi 0, %s75
      %s95 = sphi 0, %s95
      %s97 = sphi 0, %s95
      %s98 = sphi 0, %s97
      %s112 = sphi 0, %s98
      %s116 = sphi 0, %s116
      %s118 = sphi 0, %s116
      %s119 = sphi 0, %s118
      %s133 = sphi 0, %s119
      %s137 = sphi 0, %s137
      %s139 = sphi 0, %s137
      %s140 = sphi 0, %s139
      %s154 = sphi 0, %s140
      %s160 = sphi 0, %s162
      %s163 = sphi 0, %s160
      %s164 = sphi 0, %s163
      %s180 = sphi 0, %s164
      %s186 = sphi 0, %s188
      %s189 = sphi 0, %s186
      %s190 = sphi 0, %s189
      %s206 = sphi 0, %s190
      %s214 = sphi 0, %s216
      %s217 = sphi 0, %s214
      %s218 = sphi 0, %s217
      %s234 = sphi 0, %s218
    $region4: #{tpu_custom_call.1} parent=1 // loop_header_branch
      %26 = sbr.rel (%p24) target = $region8
    $region5: #{tpu_custom_call.1} parent=1 // loop_body
      %s28 = ssub.s32 %s23, 1
      %s29 = ssub.s32 %s23, 2
      %s36 = sadd.s32 1, %s31
      %p37 = scmp.ge.s32.totalorder %s36, 1
      %s38 = scalar_select %p37, 0, %s36
      %s39 = sadd.s32 1, %s30
      %s40 = scalar_select %p37, %s39, %s30
      %p41 = scmp.ge.s32.totalorder %s40, 2
      %s42 = scalar_select %p41, 0, %s40
      %s43 = ssub.s32 %s30, %s42
      %p44 = scmp.eq.s32.totalorder %s43, 0
      %s46 = sadd.s32 %s45, 1
      %s47 = scalar_select %p44, %s45, %s46
      %p50 = pneg %p44
      %p51 = scmp.eq.s32.totalorder %s23, 1
      %p52 = por %p50, %p51
      %p53 = scmp.ne.s32.totalorder %s45, %s48
      %p54 = scmp.eq.s32.totalorder %s23, 0
      %p55 = por %p53, %p54
      %p56 = scmp.ne.s32.totalorder %s45, %s48
      %p57 = scmp.eq.s32.totalorder %s28, 1
      %p58 = por %p56, %p57
      %p59 = scmp.ne.s32.totalorder %s48, %s49
      %p60 = scmp.eq.s32.totalorder %s28, 0
      %p61 = por %p59, %p60
      %p62 = scmp.ne.s32.totalorder %s48, %s49
      %p63 = scmp.eq.s32.totalorder %s29, 1
      %p64 = por %p62, %p63
      %p66 = scmp.ne.s32.totalorder %s49, %s65
      %p67 = scmp.eq.s32.totalorder %s29, 0
      %p68 = por %p66, %p67
      %s69 = ssub.s32 %s30, %s42
      %p70 = scmp.eq.s32.totalorder %s69, 0
      %s72 = sadd.s32 %s71, 1
      %s73 = scalar_select %p70, %s71, %s72
      %p76 = pneg %p70
      %p77 = scmp.eq.s32.totalorder %s23, 1
      %p78 = por %p76, %p77
      %p79 = scmp.ne.s32.totalorder %s71, %s74
      %p80 = scmp.eq.s32.totalorder %s23, 0
      %p81 = por %p79, %p80
      %p82 = scmp.ne.s32.totalorder %s71, %s74
      %p83 = scmp.eq.s32.totalorder %s28, 1
      %p84 = por %p82, %p83
      %p85 = scmp.ne.s32.totalorder %s74, %s75
      %p86 = scmp.eq.s32.totalorder %s28, 0
      %p87 = por %p85, %p86
      %p88 = scmp.ne.s32.totalorder %s74, %s75
      %p89 = scmp.eq.s32.totalorder %s29, 1
      %p90 = por %p88, %p89
      %p92 = scmp.ne.s32.totalorder %s75, %s91
      %p93 = scmp.eq.s32.totalorder %s29, 0
      %p94 = por %p92, %p93
      %s96 = sadd.s32 %s95, 1
      %p99 = scmp.eq.s32.totalorder %s23, 1
      %p100 = scmp.ne.s32.totalorder %s95, %s97
      %p101 = scmp.eq.s32.totalorder %s23, 0
      %p102 = por %p100, %p101
      %p103 = scmp.ne.s32.totalorder %s95, %s97
      %p104 = scmp.eq.s32.totalorder %s28, 1
      %p105 = por %p103, %p104
      %p106 = scmp.ne.s32.totalorder %s97, %s98
      %p107 = scmp.eq.s32.totalorder %s28, 0
      %p108 = por %p106, %p107
      %p109 = scmp.ne.s32.totalorder %s97, %s98
      %p110 = scmp.eq.s32.totalorder %s29, 1
      %p111 = por %p109, %p110
      %p113 = scmp.ne.s32.totalorder %s98, %s112
      %p114 = scmp.eq.s32.totalorder %s29, 0
      %p115 = por %p113, %p114
      %s117 = sadd.s32 %s116, 1
      %p120 = scmp.eq.s32.totalorder %s23, 1
      %p121 = scmp.ne.s32.totalorder %s116, %s118
      %p122 = scmp.eq.s32.totalorder %s23, 0
      %p123 = por %p121, %p122
      %p124 = scmp.ne.s32.totalorder %s116, %s118
      %p125 = scmp.eq.s32.totalorder %s28, 1
      %p126 = por %p124, %p125
      %p127 = scmp.ne.s32.totalorder %s118, %s119
      %p128 = scmp.eq.s32.totalorder %s28, 0
      %p129 = por %p127, %p128
      %p130 = scmp.ne.s32.totalorder %s118, %s119
      %p131 = scmp.eq.s32.totalorder %s29, 1
      %p132 = por %p130, %p131
      %p134 = scmp.ne.s32.totalorder %s119, %s133
      %p135 = scmp.eq.s32.totalorder %s29, 0
      %p136 = por %p134, %p135
      %s138 = sadd.s32 %s137, 1
      %p141 = scmp.eq.s32.totalorder %s23, 1
      %p142 = scmp.ne.s32.totalorder %s137, %s139
      %p143 = scmp.eq.s32.totalorder %s23, 0
      %p144 = por %p142, %p143
      %p145 = scmp.ne.s32.totalorder %s137, %s139
      %p146 = scmp.eq.s32.totalorder %s28, 1
      %p147 = por %p145, %p146
      %p148 = scmp.ne.s32.totalorder %s139, %s140
      %p149 = scmp.eq.s32.totalorder %s28, 0
      %p150 = por %p148, %p149
      %p151 = scmp.ne.s32.totalorder %s139, %s140
      %p152 = scmp.eq.s32.totalorder %s29, 1
      %p153 = por %p151, %p152
      %p155 = scmp.ne.s32.totalorder %s140, %s154
      %p156 = scmp.eq.s32.totalorder %s29, 0
      %p157 = por %p155, %p156
      %s158 = ssub.s32 %s31, %s38
      %p159 = scmp.eq.s32.totalorder %s158, 0
      %s161 = sadd.s32 %s160, 1
      %s162 = scalar_select %p159, %s160, %s161
      %p165 = pneg %p159
      %p166 = scmp.eq.s32.totalorder %s23, 1
      %p167 = por %p165, %p166
      %p168 = scmp.ne.s32.totalorder %s160, %s163
      %p169 = scmp.eq.s32.totalorder %s23, 0
      %p170 = por %p168, %p169
      %p171 = scmp.ne.s32.totalorder %s160, %s163
      %p172 = scmp.eq.s32.totalorder %s28, 1
      %p173 = por %p171, %p172
      %p174 = scmp.ne.s32.totalorder %s163, %s164
      %p175 = scmp.eq.s32.totalorder %s28, 0
      %p176 = por %p174, %p175
      %p177 = scmp.ne.s32.totalorder %s163, %s164
      %p178 = scmp.eq.s32.totalorder %s29, 1
      %p179 = por %p177, %p178
      %p181 = scmp.ne.s32.totalorder %s164, %s180
      %p182 = scmp.eq.s32.totalorder %s29, 0
      %p183 = por %p181, %p182
      %s184 = ssub.s32 %s31, %s38
      %p185 = scmp.eq.s32.totalorder %s184, 0
      %s187 = sadd.s32 %s186, 1
      %s188 = scalar_select %p185, %s186, %s187
      %p191 = pneg %p185
      %p192 = scmp.eq.s32.totalorder %s23, 1
      %p193 = por %p191, %p192
      %p194 = scmp.ne.s32.totalorder %s186, %s189
      %p195 = scmp.eq.s32.totalorder %s23, 0
      %p196 = por %p194, %p195
      %p197 = scmp.ne.s32.totalorder %s186, %s189
      %p198 = scmp.eq.s32.totalorder %s28, 1
      %p199 = por %p197, %p198
      %p200 = scmp.ne.s32.totalorder %s189, %s190
      %p201 = scmp.eq.s32.totalorder %s28, 0
      %p202 = por %p200, %p201
      %p203 = scmp.ne.s32.totalorder %s189, %s190
      %p204 = scmp.eq.s32.totalorder %s29, 1
      %p205 = por %p203, %p204
      %p207 = scmp.ne.s32.totalorder %s190, %s206
      %p208 = scmp.eq.s32.totalorder %s29, 0
      %p209 = por %p207, %p208
      %s210 = ssub.s32 %s30, %s42
      %s211 = ssub.s32 %s31, %s38
      %s212 = sor.u32 %s210, %s211
      %p213 = scmp.eq.s32.totalorder %s212, 0
      %s215 = sadd.s32 %s214, 1
      %s216 = scalar_select %p213, %s214, %s215
      %p219 = pneg %p213
      %p220 = scmp.eq.s32.totalorder %s23, 1
      %p221 = por %p219, %p220
      %p222 = scmp.ne.s32.totalorder %s214, %s217
      %p223 = scmp.eq.s32.totalorder %s23, 0
      %p224 = por %p222, %p223
      %p225 = scmp.ne.s32.totalorder %s214, %s217
      %p226 = scmp.eq.s32.totalorder %s28, 1
      %p227 = por %p225, %p226
      %p228 = scmp.ne.s32.totalorder %s217, %s218
      %p229 = scmp.eq.s32.totalorder %s28, 0
      %p230 = por %p228, %p229
      %p231 = scmp.ne.s32.totalorder %s217, %s218
      %p232 = scmp.eq.s32.totalorder %s29, 1
      %p233 = por %p231, %p232
      %p235 = scmp.ne.s32.totalorder %s218, %s234
      %p236 = scmp.eq.s32.totalorder %s29, 0
      %p237 = por %p235, %p236
      %p238 = scmp.le.s32.totalorder 1, %s23
      %p239 = scmp.lt.s32.totalorder %s23, 3
      %p240 = pnand %p238, %p239
      %p241 = pneg %p240
      // Predicated region
      $region9: #{tpu_custom_call.1} parent=5 // pred_check
        _
      $region10: #{tpu_custom_call.1} parent=5 // pred_check_branch
        %243 = sbr.rel (%p240) target = $region12
      $region11: #{tpu_custom_call.1} parent=5 // pred_region
        %s244 = ssub.s32 %s23, 1
        // Predicated region
        $region13: #{tpu_custom_call.1} parent=11 // pred_check
          %p245 = pneg %p108
        $region14: #{tpu_custom_call.1} parent=11 // pred_check_branch
          %247 = sbr.rel (%p245) target = $region16
        $region15: #{tpu_custom_call.1} parent=11 // pred_region
          %249 = vsyncadd [#allocation7], 0
          %s250 = sshll.u32 %s2, 4
          %s251 = int_to_ptr.hbm [resolvable:$true] %s250
          %s252 = sshll.u32 [#allocation8], 4
          %s253 = int_to_ptr.vmem [resolvable:$true] %s252
          %258 = dma.hbm_to_vmem [thread:$0]  %s251, 128, %s253, [#allocation7], 64, 64, 4
        $region16: #{tpu_custom_call.1} parent=11 // pred_fallthru
          _
        // Predicated region
        $region17: #{tpu_custom_call.1} parent=11 // pred_check
          %p259 = pneg %p129
        $region18: #{tpu_custom_call.1} parent=11 // pred_check_branch
          %261 = sbr.rel (%p259) target = $region20
        $region19: #{tpu_custom_call.1} parent=11 // pred_region
          %263 = vsyncadd [#allocation10], 0
          %s264 = sshll.u32 %s3, 4
          %s265 = int_to_ptr.hbm [resolvable:$true] %s264
          %s266 = sshll.u32 [#allocation9], 4
          %s267 = int_to_ptr.vmem [resolvable:$true] %s266
          %272 = dma.hbm_to_vmem [thread:$0]  %s265, 192, %s267, [#allocation10], 64, 64, 4
        $region20: #{tpu_custom_call.1} parent=11 // pred_fallthru
          _
        // Predicated region
        $region21: #{tpu_custom_call.1} parent=11 // pred_check
          %p273 = pneg %p150
        $region22: #{tpu_custom_call.1} parent=11 // pred_check_branch
          %275 = sbr.rel (%p273) target = $region24
        $region23: #{tpu_custom_call.1} parent=11 // pred_region
          _
        $region24: #{tpu_custom_call.1} parent=11 // pred_fallthru
          _
        // Predicated region
        $region25: #{tpu_custom_call.1} parent=11 // pred_check
          %p276 = pneg %p176
        $region26: #{tpu_custom_call.1} parent=11 // pred_check_branch
          %278 = sbr.rel (%p276) target = $region28
        $region27: #{tpu_custom_call.1} parent=11 // pred_region
          %280 = vsyncadd [#allocation10], 0
          %s281 = smul.addr %s33, 4
          %s282 = scalar_lea.hbm %s5, %s281
          %s283 = sshll.u32 %s282, 4
          %s284 = int_to_ptr.hbm [resolvable:$true] %s283
          %s285 = sshll.u32 [#allocation11], 4
          %s286 = int_to_ptr.vmem [resolvable:$true] %s285
          %291 = dma.hbm_to_vmem [thread:$0]  %s284, 1024, %s286, [#allocation10], 64, 64, 4
        $region28: #{tpu_custom_call.1} parent=11 // pred_fallthru
          _
        // Predicated region
        $region29: #{tpu_custom_call.1} parent=11 // pred_check
          %p292 = pneg %p202
        $region30: #{tpu_custom_call.1} parent=11 // pred_check_branch
          %294 = sbr.rel (%p292) target = $region32
        $region31: #{tpu_custom_call.1} parent=11 // pred_region
          %p295 = scmp.lt.s32.totalorder %s33, 0
          %s296 = scalar_select %p295, %s33, 0
          %s297 = scalar_lea.vmem %s6, %s296
        $region32: #{tpu_custom_call.1} parent=11 // pred_fallthru
          _
      $region12: #{tpu_custom_call.1} parent=5 // pred_fallthru
        _
      %p298 = scmp.lt.s32.totalorder %s23, 2
      // Predicated region
      $region33: #{tpu_custom_call.1} parent=5 // pred_check
        %p299 = pneg %p298
      $region34: #{tpu_custom_call.1} parent=5 // pred_check_branch
        %301 = sbr.rel (%p299) target = $region36
      $region35: #{tpu_custom_call.1} parent=5 // pred_region
        // Predicated region
        $region37: #{tpu_custom_call.1} parent=35 // pred_check
          %p302 = pneg %p55
        $region38: #{tpu_custom_call.1} parent=35 // pred_check_branch
          %304 = sbr.rel (%p302) target = $region40
        $region39: #{tpu_custom_call.1} parent=35 // pred_region
          %s305 = sand.u32 %s45, 1
          %s306 = scalar_lea.sflag [#allocation4], %s305
          %s307 = sand.u32 %s45, 1
          %s308 = smul.addr %s307, 8
          %s309 = scalar_lea.vmem [#allocation3], %s308
          %311 = vsyncadd %s306, 0
          %s312 = smul.addr %s30, 8
          %s313 = scalar_lea.hbm %s0, %s312
          %s315 = sshll.u32 %s313, 4
          %s316 = int_to_ptr.hbm [resolvable:$true] %s315
          %s317 = sshll.u32 %s309, 4
          %s318 = int_to_ptr.vmem [resolvable:$true] %s317
          %320 = dma.hbm_to_vmem [thread:$0]  %s316, 128, %s318, %s306
        $region40: #{tpu_custom_call.1} parent=35 // pred_fallthru
          _
        // Predicated region
        $region41: #{tpu_custom_call.1} parent=35 // pred_check
          %p321 = pneg %p81
        $region42: #{tpu_custom_call.1} parent=35 // pred_check_branch
          %323 = sbr.rel (%p321) target = $region44
        $region43: #{tpu_custom_call.1} parent=35 // pred_region
          %s324 = sand.u32 %s23, 1
          %s325 = scalar_lea.sflag [#allocation7], %s324
          %s326 = sand.u32 %s71, 1
          %s327 = smul.addr %s326, 8
          %s328 = scalar_lea.vmem [#allocation6], %s327
          %330 = vsyncadd %s325, 0
          %s331 = smul.addr %s30, 8
          %s332 = scalar_lea.hbm %s1, %s331
          %s334 = sshll.u32 %s332, 4
          %s335 = int_to_ptr.hbm [resolvable:$true] %s334
          %s336 = sshll.u32 %s328, 4
          %s337 = int_to_ptr.vmem [resolvable:$true] %s336
          %339 = dma.hbm_to_vmem [thread:$0]  %s335, 128, %s337, %s325
        $region44: #{tpu_custom_call.1} parent=35 // pred_fallthru
          _
      $region36: #{tpu_custom_call.1} parent=5 // pred_fallthru
        _
      %p340 = scmp.le.s32.totalorder 1, %s23
      %p341 = scmp.lt.s32.totalorder %s23, 3
      %p342 = pnand %p340, %p341
      %p343 = pneg %p342
      // Predicated region
      $region45: #{tpu_custom_call.1} parent=5 // pred_check
        _
      $region46: #{tpu_custom_call.1} parent=5 // pred_check_branch
        %345 = sbr.rel (%p342) target = $region48
      $region47: #{tpu_custom_call.1} parent=5 // pred_region
        %s346 = ssub.s32 %s23, 1
        %s347 = sand.u32 %s48, 1
        %s348 = scalar_lea.sflag [#allocation4], %s347
        %s349 = sand.u32 %s48, 1
        %s350 = smul.addr %s349, 8
        %s351 = scalar_lea.vmem [#allocation3], %s350
        // Predicated region
        $region49: #{tpu_custom_call.1} parent=47 // pred_check
          %p352 = pneg %p61
        $region50: #{tpu_custom_call.1} parent=47 // pred_check_branch
          %354 = sbr.rel (%p352) target = $region52
        $region51: #{tpu_custom_call.1} parent=47 // pred_region
          %356 = dma.done %s348, 128
        $region52: #{tpu_custom_call.1} parent=47 // pred_fallthru
          _
        %s357 = sand.u32 %s28, 1
        %s358 = scalar_lea.sflag [#allocation7], %s357
        %s359 = sand.u32 %s74, 1
        %s360 = smul.addr %s359, 8
        %s361 = scalar_lea.vmem [#allocation6], %s360
        // Predicated region
        $region53: #{tpu_custom_call.1} parent=47 // pred_check
          %p362 = pneg %p87
        $region54: #{tpu_custom_call.1} parent=47 // pred_check_branch
          %364 = sbr.rel (%p362) target = $region56
        $region55: #{tpu_custom_call.1} parent=47 // pred_region
          %366 = dma.done %s358, 128
        $region56: #{tpu_custom_call.1} parent=47 // pred_fallthru
          _
        // Predicated region
        $region57: #{tpu_custom_call.1} parent=47 // pred_check
          %p367 = pneg %p108
        $region58: #{tpu_custom_call.1} parent=47 // pred_check_branch
          %369 = sbr.rel (%p367) target = $region60
        $region59: #{tpu_custom_call.1} parent=47 // pred_region
          %371 = dma.done [#allocation7], 128
        $region60: #{tpu_custom_call.1} parent=47 // pred_fallthru
          _
        // Predicated region
        $region61: #{tpu_custom_call.1} parent=47 // pred_check
          %p372 = pneg %p129
        $region62: #{tpu_custom_call.1} parent=47 // pred_check_branch
          %374 = sbr.rel (%p372) target = $region64
        $region63: #{tpu_custom_call.1} parent=47 // pred_region
          %376 = dma.done [#allocation10], 192
        $region64: #{tpu_custom_call.1} parent=47 // pred_fallthru
          _
        // Predicated region
        $region65: #{tpu_custom_call.1} parent=47 // pred_check
          %p377 = pneg %p176
        $region66: #{tpu_custom_call.1} parent=47 // pred_check_branch
          %379 = sbr.rel (%p377) target = $region68
        $region67: #{tpu_custom_call.1} parent=47 // pred_region
          %381 = dma.done [#allocation10], 1024
        $region68: #{tpu_custom_call.1} parent=47 // pred_fallthru
          _
        %s382 = sand.u32 %s48, 1
        %s383 = scalar_lea.sflag [#allocation4], %s382
        %s384 = sand.u32 %s48, 1
        %s385 = smul.addr %s384, 8
        %s386 = scalar_lea.vmem [#allocation3], %s385
        %p387 = pneg %p61
        %p388 = pneg %p58
        %s389 = sand.u32 %s28, 1
        %s390 = scalar_lea.sflag [#allocation7], %s389
        %s391 = sand.u32 %s74, 1
        %s392 = smul.addr %s391, 8
        %s393 = scalar_lea.vmem [#allocation6], %s392
        %p394 = pneg %p87
        %p395 = pneg %p84
        %p396 = pneg %p108
        %p397 = pneg %p105
        %p398 = pneg %p129
        %p399 = pneg %p126
        %p400 = pneg %p150
        %p401 = pneg %p147
        %p402 = pneg %p176
        %p403 = pneg %p173
        %p404 = scmp.lt.s32.totalorder %s33, 0
        %s405 = scalar_select %p404, %s33, 0
        %s406 = scalar_lea.vmem %s6, %s405
        %p407 = pneg %p202
        %p408 = pneg %p199
        %p409 = pneg %p230
        %p410 = pneg %p227
        %s411 = sand.u32 %s217, 1
        %s412 = scalar_lea.sflag [#allocation5], %s411
        %s413 = sand.u32 %s217, 1
        %s414 = smul.addr %s413, 8
        %s415 = scalar_lea.vmem [#allocation12], %s414
        %p416 = scmp.lt.s32.totalorder %s33, 0
        %s417 = scalar_select %p416, %s33, 0
        %s418 = scalar_lea.vmem %s6, %s417
        %p420 = scmp.eq.s32.totalorder %s33, 0
        // Predicated region
        $region69: #{tpu_custom_call.1} parent=47 // pred_check
          %p421 = pneg %p420
        $region70: #{tpu_custom_call.1} parent=47 // pred_check_branch
          %423 = sbr.rel (%p421) target = $region72
        $region71: #{tpu_custom_call.1} parent=47 // pred_region
          %v424 = vld [vmem:[%s351] sm:$0xff]
          %v425 = vpack.c.bf16 %v424, %v424
          %v426 = vld [vmem:[#allocation8] sm:$0xf]
          %v427 = vld [vmem:[#allocation8 + $0x4] sm:$0xf]
          %v428 = vld [vmem:[%s361] sm:$0xff]
          %v429 = vpack.c.bf16 %v428, %v428
          %v430 = vld [vmem:[#allocation9] sm:$0xf]
          %v431 = vld [vmem:[#allocation9 + $0x4] sm:$0xf]
          %v432 = vld [vmem:[#allocation9 + $0x8] sm:$0xf]
          %v436 = vunpack.c.l.b16 %v430
          %v437 = vunpack.c.l.b16 %v431
          %v438 = vunpack.c.l.b16 %v432
          %v439 = vpack.c.b16 %v437, %v436
          %v440 = vpack.c.b16 %v438, %v438
          %vm442 = vcmask 195584
          %v444 = vsel %vm442, %v429, 0
          %vm446 = vcmask 1043456
          %v448 = vsel %vm446, %v440, 0
          %450 = vmatpush.bf16.msra.mxu0 0
          %451 = vmatpush.bf16.msra.mxu0 0
          %452 = vmatpush.bf16.msra.mxu0 0
          %453 = vmatpush.bf16.msra.mxu0 0
          %454 = vmatpush.bf16.msra.mxu0 0
          %455 = vmatpush.bf16.msra.mxu0 0
          %456 = vmatpush.bf16.msra.mxu0 %v448
          %457 = vmatpush.bf16.msra.mxu0 %v439
          %458 = vmatmul.bf16.gmra.mxu0 %v444
          %v459 = vpop.f32.mrf.mxu0
          %v460 = vadd.f32 0.0, %v459
          %v461 = vpop.f32.mrf.mxu0
          %462 = vdwg.mxu0
          %v465 = vunpack.c.l.b16 %v426
          %v466 = vunpack.c.l.b16 %v427
          %v467 = vpack.c.b16 %v466, %v465
          %vm469 = vcmask 130048
          %v471 = vsel %vm469, %v425, 0
          %473 = vmatpush.bf16.msra.mxu0 0
          %474 = vmatpush.bf16.msra.mxu0 0
          %475 = vmatpush.bf16.msra.mxu0 0
          %476 = vmatpush.bf16.msra.mxu0 0
          %477 = vmatpush.bf16.msra.mxu0 0
          %478 = vmatpush.bf16.msra.mxu0 0
          %479 = vmatpush.bf16.msra.mxu0 0
          %480 = vmatpush.bf16.msra.mxu0 %v467
          %481 = vmatmul.bf16.gmra.mxu0 %v471
          %v482 = vpop.f32.mrf.mxu0
          %v483 = vadd.f32 %v460, %v482
          %v484 = vpop.f32.mrf.mxu0
          %485 = vdwg.mxu0
          %v486 = vld [vmem:[%s4] sm:$0x1]
          %v488 = vperm.slane %v486, 0
          %v490 = vadd.f32 %v483, %v488
          %v491 = vmax.f32 %v490, 0.0
          %v492 = vpack.c.bf16 %v491, %v491
          %493 = vst [vmem:[#allocation2] sm:$0xf] %v492
        $region72: #{tpu_custom_call.1} parent=47 // pred_fallthru
          _
        %v494 = vld [vmem:[#allocation2] sm:$0xf]
        %v495 = vld [vmem:[#allocation11] sm:$0xf]
        %v496 = vld [vmem:[#allocation11 + $0x4] sm:$0xf]
        %v497 = vld [vmem:[#allocation11 + $0x8] sm:$0xf]
        %v498 = vld [vmem:[#allocation11 + $0xc] sm:$0xf]
        %v499 = vld [vmem:[#allocation11 + $0x10] sm:$0xf]
        %v500 = vld [vmem:[#allocation11 + $0x14] sm:$0xf]
        %v501 = vld [vmem:[#allocation11 + $0x18] sm:$0xf]
        %v502 = vld [vmem:[#allocation11 + $0x1c] sm:$0xf]
        %v503 = vld [vmem:[#allocation11 + $0x20] sm:$0xf]
        %v504 = vld [vmem:[#allocation11 + $0x24] sm:$0xf]
        %v505 = vld [vmem:[#allocation11 + $0x28] sm:$0xf]
        %v506 = vld [vmem:[#allocation11 + $0x2c] sm:$0xf]
        %v507 = vld [vmem:[#allocation11 + $0x30] sm:$0xf]
        %v508 = vld [vmem:[#allocation11 + $0x34] sm:$0xf]
        %v509 = vld [vmem:[#allocation11 + $0x38] sm:$0xf]
        %v510 = vld [vmem:[#allocation11 + $0x3c] sm:$0xf]
        %v511 = vld [vmem:[%s418] sm:$0x1]
        %v513 = vperm.slane %v511, 0
        %v531 = vunpack.c.l.b16 %v495
        %v532 = vunpack.c.l.b16 %v496
        %v533 = vunpack.c.l.b16 %v497
        %v534 = vunpack.c.l.b16 %v498
        %v535 = vunpack.c.l.b16 %v499
        %v536 = vunpack.c.l.b16 %v500
        %v537 = vunpack.c.l.b16 %v501
        %v538 = vunpack.c.l.b16 %v502
        %v539 = vunpack.c.l.b16 %v503
        %v540 = vunpack.c.l.b16 %v504
        %v541 = vunpack.c.l.b16 %v505
        %v542 = vunpack.c.l.b16 %v506
        %v543 = vunpack.c.l.b16 %v507
        %v544 = vunpack.c.l.b16 %v508
        %v545 = vunpack.c.l.b16 %v509
        %v546 = vunpack.c.l.b16 %v510
        %v547 = vpack.c.b16 %v532, %v531
        %v548 = vpack.c.b16 %v534, %v533
        %v549 = vpack.c.b16 %v536, %v535
        %v550 = vpack.c.b16 %v538, %v537
        %v551 = vpack.c.b16 %v540, %v539
        %v552 = vpack.c.b16 %v542, %v541
        %v553 = vpack.c.b16 %v544, %v543
        %v554 = vpack.c.b16 %v546, %v545
        %563 = vmatpush.bf16.msra.mxu0 %v554
        %564 = vmatpush.bf16.msra.mxu0 %v553
        %565 = vmatpush.bf16.msra.mxu0 %v552
        %566 = vmatpush.bf16.msra.mxu0 %v551
        %567 = vmatpush.bf16.msra.mxu0 %v550
        %568 = vmatpush.bf16.msra.mxu0 %v549
        %569 = vmatpush.bf16.msra.mxu0 %v548
        %570 = vmatpush.bf16.msra.mxu0 %v547
        %571 = vmatmul.bf16.gmra.mxu0 %v494
        %v572 = vpop.f32.mrf.mxu0
        %v573 = vadd.f32 %v513, %v572
        %v574 = vpop.f32.mrf.mxu0
        %575 = vdwg.mxu0
        %576 = vst [vmem:[%s415] sm:$0xff] %v573
        %s577 = sand.u32 %s217, 1
        %s578 = scalar_lea.sflag [#allocation5], %s577
        %s579 = sand.u32 %s217, 1
        %s580 = smul.addr %s579, 8
        %s581 = scalar_lea.vmem [#allocation12], %s580
        // Predicated region
        $region73: #{tpu_custom_call.1} parent=47 // pred_check
          %p582 = pneg %p227
        $region74: #{tpu_custom_call.1} parent=47 // pred_check_branch
          %584 = sbr.rel (%p582) target = $region76
        $region75: #{tpu_custom_call.1} parent=47 // pred_region
          %586 = vsyncadd %s578, 0
          %s587 = sadd.s32 %s33, %s32
          %s588 = smul.addr %s587, 8
          %s589 = scalar_lea.hbm %s7, %s588
          %s591 = sshll.u32 %s581, 4
          %s592 = int_to_ptr.vmem [resolvable:$true] %s591
          %s593 = sshll.u32 %s589, 4
          %s594 = int_to_ptr.hbm [resolvable:$true] %s593
          %596 = dma.vmem_to_hbm [thread:$0]  %s592, 128, %s594, %s578
        $region76: #{tpu_custom_call.1} parent=47 // pred_fallthru
          _
      $region48: #{tpu_custom_call.1} parent=5 // pred_fallthru
        _
      %p597 = scmp.le.s32.totalorder 2, %s23
      // Predicated region
      $region77: #{tpu_custom_call.1} parent=5 // pred_check
        %p598 = pneg %p597
      $region78: #{tpu_custom_call.1} parent=5 // pred_check_branch
        %600 = sbr.rel (%p598) target = $region80
      $region79: #{tpu_custom_call.1} parent=5 // pred_region
        %s601 = ssub.s32 %s23, 2
        // Predicated region
        $region81: #{tpu_custom_call.1} parent=79 // pred_check
          %p602 = pneg %p233
        $region82: #{tpu_custom_call.1} parent=79 // pred_check_branch
          %604 = sbr.rel (%p602) target = $region84
        $region83: #{tpu_custom_call.1} parent=79 // pred_region
          %s605 = sand.u32 %s218, 1
          %s606 = scalar_lea.sflag [#allocation5], %s605
          %s607 = sand.u32 %s218, 1
          %s608 = smul.addr %s607, 8
          %s609 = scalar_lea.vmem [#allocation12], %s608
          %611 = dma.done %s606, 128
        $region84: #{tpu_custom_call.1} parent=79 // pred_fallthru
          _
      $region80: #{tpu_custom_call.1} parent=5 // pred_fallthru
        _
    $region6: #{tpu_custom_call.1} parent=1 // loop_footer
      %s27 = sadd.s32 1, %s23
    $region7: #{tpu_custom_call.1} parent=1 // loop_footer_branch
      %22 = sbr.rel target = $region3
    $region8: #{tpu_custom_call.1} parent=1 // loop_exit
      _
    %612 = vsyncpa [#allocation4], 1
    %s613 = scalar_lea.sflag [#allocation4], 1
    %614 = vsyncpa %s613, 1
    %615 = vsyncpa [#allocation7], 1
    %s616 = scalar_lea.sflag [#allocation7], 1
    %617 = vsyncpa %s616, 1
    %618 = vsyncpa [#allocation10], 1
    %619 = vsyncpa [#allocation5], 1
    %s620 = scalar_lea.sflag [#allocation5], 1
    %621 = vsyncpa %s620, 1

</llo_original>
